<compile_context>
chip_gen: v6e
topology: v6e:2x2x1
jax: 0.10.0
libtpu: 0.0.40
codegen_flags: <defaults>
</compile_context>

<pallas_src>
import jax
import jax.numpy as jnp
from jax.experimental import pallas as pl
from jax.experimental.pallas import tpu as pltpu


# ----------------------------- kernels ------------------------------------- #

def _mean_center_kernel(x_ref, o_ref):
    # x: (rows, lane_tile). Subtract the per-column mean over rows.
    x = x_ref[...].astype(jnp.float32)
    mean = jnp.sum(x, axis=0, keepdims=True) * (1.0 / x.shape[0])
    o_ref[...] = (x - mean).astype(o_ref.dtype)


def _l2_normalize_kernel(x_ref, o_ref):
    # x: (rows, lane_tile). Divide each column by its L2 norm over rows.
    x = x_ref[...].astype(jnp.float32)
    sumsq = jnp.sum(x * x, axis=0, keepdims=True)
    r = jax.lax.rsqrt(sumsq)                     # EUP slot (effectively free)
    r = r * (1.5 - 0.5 * sumsq * r * r)          # one NR step -> f32-accurate
    o_ref[...] = (x * r).astype(o_ref.dtype)


# ----------------------------- tiling -------------------------------------- #

def _pick_lane_tile(rows, width, itemsize,
                    max_block_bytes=4 << 20, max_tile=2048):
    """Lane-tile width: whole extent if small, else multiples of 128 under a
    ~4 MiB per-block VMEM budget (safe double-buffered on v5e/v6e/v7x)."""
    if width <= max_tile and rows * width * itemsize <= max_block_bytes:
        return width                              # single full-extent block
    tile = (max_block_bytes // (rows * itemsize)) // 128 * 128
    tile = max(128, min(tile, max_tile))
    return min(tile, pl.cdiv(width, 128) * 128)


def _normalize_columns(x2d, kernel):
    """Run `kernel` over (rows, width) with the full reduction axis resident
    and the lane axis tiled by a parallel grid."""
    rows, width = x2d.shape
    tile = _pick_lane_tile(rows, width, x2d.dtype.itemsize)
    grid = (pl.cdiv(width, tile),)
    return pl.pallas_call(
        kernel,
        out_shape=jax.ShapeDtypeStruct((rows, width), x2d.dtype),
        grid_spec=pltpu.PrefetchScalarGridSpec(
            num_scalar_prefetch=0,
            grid=grid,
            in_specs=[pl.BlockSpec((rows, tile), lambda j: (0, j))],
            out_specs=pl.BlockSpec((rows, tile), lambda j: (0, j)),
        ),
        compiler_params=pltpu.CompilerParams(
            dimension_semantics=("parallel",),
            vmem_limit_bytes=32 << 20,
        ),
    )(x2d)


# ----------------------------- module wrapper ------------------------------ #

def _reference(trajectory_batch):
    trajectory = trajectory_batch["pose_vector_estimate_lf"]
    global_features = trajectory_batch["global_features"]
    gf_norm = global_features / jnp.linalg.norm(
        global_features, axis=-2, keepdims=True)
    traj_mean = trajectory.mean(axis=-2, keepdims=True)
    return {
        "normalized_pose_vector_estimate_wf": trajectory - traj_mean,
        "normalized_global_features": gf_norm,
    }


def trajectory_normalizer(trajectory_batch, *, use_pallas=None):
    """JAX/Pallas equivalent of TrajectoryNormalizer.forward."""
    trajectory = trajectory_batch["pose_vector_estimate_lf"]
    global_features = trajectory_batch["global_features"]

    B, T, D = trajectory.shape
    Bg, N, F = global_features.shape
    assert B == Bg, "batch dims must match"

    if use_pallas is None:
        # Tiny problems: the fused XLA path beats pallas_call launch + DMA setup.
        use_pallas = (trajectory.size + global_features.size) >= (1 << 16)
    if not use_pallas:
        return _reference(trajectory_batch)

    # Lane-dense layout (pure layout plumbing in the wrapper):
    # reduction axis (T / N) on sublanes, batch*feature folded onto lanes.
    traj2d = jnp.transpose(trajectory, (1, 0, 2)).reshape(T, B * D)
    gf2d = jnp.transpose(global_features, (1, 0, 2)).reshape(N, B * F)

    traj_out2d = _normalize_columns(traj2d, _mean_center_kernel)
    gf_out2d = _normalize_columns(gf2d, _l2_normalize_kernel)

    traj_out = traj_out2d.reshape(T, B, D).transpose(1, 0, 2)
    gf_out = gf_out2d.reshape(N, B, F).transpose(1, 0, 2)

    return {
        "normalized_pose_vector_estimate_wf": traj_out,
        "normalized_global_features": gf_out,
    }


# ----------------------------- test ---------------------------------------- #

if __name__ == "__main__":
    key = jax.random.PRNGKey(0)

    def _check(B, T, D, N, F):
        k1, k2 = jax.random.split(jax.random.fold_in(key, B * 1000 + N))
        trajectory = jax.random.normal(k1, (B, T, D), dtype=jnp.float32)
        global_features = jax.random.normal(k2, (B, N, F), dtype=jnp.float32)
        batch = {
            "pose_vector_estimate_lf": trajectory,
            "global_features": global_features,
        }
        out = trajectory_normalizer(batch, use_pallas=True)  # force kernel path
        jax.block_until_ready(out)
        ref = _reference(batch)
        for name in out:
            assert jnp.allclose(out[name], ref[name], atol=1e-5, rtol=1e-4), (
                f"mismatch in {name} at B={B},T={T},D={D},N={N},F={F}")

    # Small shapes consistent with the module.
    _check(B=2, T=8, D=6, N=16, F=32)
    # Larger case that exercises the multi-tile lane grid (ragged last block).
    _check(B=8, T=32, D=6, N=64, F=384)

    print("KERNEL_OK")
</pallas_src>

<mosaic_0001>
module attributes {stable_mosaic.version = 11 : i64} {
  func.func @_mean_center_kernel(%arg0: i32, %arg1: memref<8x12xf32, #tpu.memory_space<vmem>>, %arg2: memref<8x12xf32, #tpu.memory_space<vmem>>) attributes {dimension_semantics = [#tpu.dimension_semantics<parallel>], iteration_bounds = array<i64: 1>, scalar_prefetch = 0 : i64, scratch_operands = 0 : i64, tpu.core_type = #tpu.core_type<tc>, window_params = [{transform_indices = @transform_0, window_bounds = array<i64: 8, 12>}, {transform_indices = @transform_1, window_bounds = array<i64: 8, 12>}]} {
    %c0 = arith.constant 0 : index
    %c0_0 = arith.constant 0 : index
    %0 = vector.load %arg1[%c0, %c0_0] : memref<8x12xf32, #tpu.memory_space<vmem>>, vector<8x12xf32>
    %cst = arith.constant dense<0.000000e+00> : vector<12xf32>
    %1 = vector.multi_reduction <add>, %0, %cst [0] : vector<8x12xf32> to vector<12xf32>
    %2 = vector.shape_cast %1 : vector<12xf32> to vector<1x12xf32>
    %cst_1 = arith.constant 1.250000e-01 : f32
    %3 = vector.broadcast %cst_1 : f32 to vector<1x12xf32>
    %4 = arith.mulf %2, %3 : vector<1x12xf32>
    %5 = vector.broadcast %4 : vector<1x12xf32> to vector<8x12xf32>
    %6 = arith.subf %0, %5 : vector<8x12xf32>
    %c0_2 = arith.constant 0 : index
    %c0_3 = arith.constant 0 : index
    %7 = vector.load %arg2[%c0_2, %c0_3] : memref<8x12xf32, #tpu.memory_space<vmem>>, vector<8x12xf32>
    tpu.vector_store %arg2[%c0_2, %c0_3], %6 {strides = array<i32>} : memref<8x12xf32, #tpu.memory_space<vmem>>, vector<8x12xf32>,
    return
  }
  func.func @transform_0(%arg0: i32) -> (i32, i32) {
    %c0_i32 = arith.constant 0 : i32
    %c0_i32_0 = arith.constant 0 : i32
    return %c0_i32, %arg0 : i32, i32
  }
  func.func @transform_1(%arg0: i32) -> (i32, i32) {
    %c0_i32 = arith.constant 0 : i32
    %c0_i32_0 = arith.constant 0 : i32
    return %c0_i32, %arg0 : i32, i32
  }
}

</mosaic_0001>

<llo_original>
// kernel: tpu_custom_call.1
$region0: #{tpu_custom_call.1}
  #allocation0 [shape = 'u32[]', space=smem, size = 0x4, offset = 0x4, fixed_abs, tag = 'smem constant byte address 0x4 - core index']
  #allocation1 [shape = 'u32[144,128]{1,0:T(1,128)}', space=vmem, size = 0x12000, scoped, tag = 'internal scratch']
  %s0 = inlined_call_operand.hbm [shape: f32[8,12], index: 0, kind: input, shape index: {}]
  %s1 = inlined_call_operand.hbm [shape: f32[8,12], index: 1, kind: output, shape index: {}]
  %s2 = sld [smem:[#allocation0]]
  $region18: #{tpu_custom_call.1} parent=0
    _
  %s4 = ssub.s32 1, %s2
  %s5 = scalar_select 0, %s4, %s2
  $region1: #{tpu_custom_call.1} parent=0
    #allocation2 [shape = 'u8[4096]{0}', space=vmem, size = 0x1000, scoped, tag = 'input window, operand 0, single buffered']
    #allocation3 [shape = 's32[1]{0}', space=sflag, size = 0x4, scoped, tag = 'scoped memory for tpu_custom_call.1']
    #allocation4 [shape = 's32[1]{0}', space=sflag, size = 0x4, scoped, tag = 'scoped memory for tpu_custom_call.1']
    #allocation5 [shape = 'u8[4096]{0}', space=vmem, size = 0x1000, scoped, tag = 'output window, operand 0, single buffered']
    %6 = vsyncpa [#allocation3], 0
    %7 = vsyncpa [#allocation4], 0
    // Predicated region
    $region2: #{tpu_custom_call.1} parent=1 // pred_check
      _
    $region3: #{tpu_custom_call.1} parent=1 // pred_check_branch
      %9 = sbr.rel (0) target = $region5
    $region4: #{tpu_custom_call.1} parent=1 // pred_region
      %s11 = ssub.s32 128, 128
      %12 = vsyncadd [#allocation3], %s11
      %s14 = sshll.u32 [#allocation2], 4
      %s15 = int_to_ptr.vmem [resolvable:$true] %s14
      %17 = dma.hbm_to_vmem [thread:$0]  %s0, 128, %s15, [#allocation3]
    $region5: #{tpu_custom_call.1} parent=1 // pred_fallthru
      _
    // Predicated region
    $region6: #{tpu_custom_call.1} parent=1 // pred_check
      _
    $region7: #{tpu_custom_call.1} parent=1 // pred_check_branch
      %19 = sbr.rel (0) target = $region9
    $region8: #{tpu_custom_call.1} parent=1 // pred_region
      %20 = dma.done [#allocation3], 128
    $region9: #{tpu_custom_call.1} parent=1 // pred_fallthru
      _
    %v21 = vld [vmem:[#allocation2] sm:$0xff]
    %vm22 = vcmask 97280
    %v23 = vsel %vm22, %v21, 0.0
    %v24 = vrot.slane %v23, 4
    %v25 = vadd.f32 %v23, %v24
    %v26 = vrot.slane %v25, 2
    %v27 = vadd.f32 %v25, %v26
    %v28 = vrot.slane %v27, 1
    %v29 = vadd.f32 %v27, %v28
    %v30 = vmul.f32 %v29, 0.125
    %v31 = vsub.f32 %v21, %v30
    %32 = vst.msk [vmem:[#allocation5] sm:$0xff] %vm22, %v31
    // Predicated region
    $region10: #{tpu_custom_call.1} parent=1 // pred_check
      _
    $region11: #{tpu_custom_call.1} parent=1 // pred_check_branch
      %34 = sbr.rel (0) target = $region13
    $region12: #{tpu_custom_call.1} parent=1 // pred_region
      %s36 = ssub.s32 128, 128
      %37 = vsyncadd [#allocation4], %s36
      %s39 = sshll.u32 [#allocation5], 4
      %s40 = int_to_ptr.vmem [resolvable:$true] %s39
      %42 = dma.vmem_to_hbm [thread:$0]  %s40, 128, %s1, [#allocation4]
    $region13: #{tpu_custom_call.1} parent=1 // pred_fallthru
      _
    // Predicated region
    $region14: #{tpu_custom_call.1} parent=1 // pred_check
      _
    $region15: #{tpu_custom_call.1} parent=1 // pred_check_branch
      %44 = sbr.rel (0) target = $region17
    $region16: #{tpu_custom_call.1} parent=1 // pred_region
      %45 = dma.done [#allocation4], 128
    $region17: #{tpu_custom_call.1} parent=1 // pred_fallthru
      _
    %46 = vsyncpa [#allocation3], 1
    %47 = vsyncpa [#allocation4], 1

</llo_original>
